<compile_context>
chip_gen: v5e
topology: v5e:2x2
jax: 0.10.0
libtpu: 0.0.40
codegen_flags: <defaults>
</compile_context>

<pallas_src>
import jax
import jax.numpy as jnp
from jax.experimental import pallas as pl
from jax.experimental.pallas import tpu as pltpu


def _hd_inverse_kernel(xT_ref, w1_ref, b1_ref, w2_ref, b2_ref, w2sT_ref,
                       w1oT_ref, out_ref):
    # Weights/biases are tiny and VMEM-resident across the batch grid.
    w1 = w1_ref[...]        # (HD, D)   PyTorch layout (out_features, in_features)
    b1 = b1_ref[...]        # (HD, 1)
    w2 = w2_ref[...]        # (HD, HD)
    b2 = b2_ref[...]        # (HD, 1)
    w2sT = w2sT_ref[...]    # (HD, HD)  = (diag(w3) @ W2)^T
    w1oT = w1oT_ref[...]    # (D, HD)   = concat([-W1[:,half:], W1[:,:half]], 1)^T

    xT = xT_ref[...].astype(jnp.float32)                                      # (D, TN)

    # Forward pass of hnet; batch on lanes -> canonical MXU feeds, no transposes.
    h1 = jnp.tanh(jnp.dot(w1, xT, preferred_element_type=jnp.float32) + b1)   # (HD, TN)
    h2 = jnp.tanh(jnp.dot(w2, h1, preferred_element_type=jnp.float32) + b2)   # (HD, TN)

    # Analytic reverse-mode gradient of sum(H) wrt x (w3 folded into w2sT).
    g1 = jnp.dot(w2sT, 1.0 - h2 * h2,
                 preferred_element_type=jnp.float32) * (1.0 - h1 * h1)        # (HD, TN)

    # Final matmul produces [-dH/dp, dH/dq]^T directly (permutation folded in).
    out_ref[...] = jnp.dot(w1oT, g1,
                           preferred_element_type=jnp.float32).astype(out_ref.dtype)


def hd_inverse_net(t, x, params, *, tile_n=2048):
    """t is unused by the forward pass (kept for API fidelity)."""
    del t
    w1, b1, w2, b2, w3, _b3 = params
    n, d_in = x.shape
    hd = w1.shape[0]
    half = d_in // 2
    lane = 128

    # Batch tile: multiple of 128 (lane-dense stores), no larger than the padded
    # batch, and small enough that the grid keeps >= 2 steps when the batch
    # allows it (v7x shards the "parallel" axis over its 2 TensorCores).
    two_step_cap = max(lane, ((pl.cdiv(n, 2) + lane - 1) // lane) * lane)
    tile_n = ((max(lane, tile_n) + lane - 1) // lane) * lane
    tile_n = min(tile_n, two_step_cap)
    n_pad = pl.cdiv(n, tile_n) * tile_n
    grid = (n_pad // tile_n,)

    f32 = jnp.float32
    w1f = w1.astype(f32)                                   # (HD, D)
    w2f = w2.astype(f32)                                   # (HD, HD)
    b1c = b1.reshape(hd, 1).astype(f32)                    # (HD, 1)
    b2c = b2.reshape(hd, 1).astype(f32)                    # (HD, 1)
    # Fold w3 into the backward weight:  g1 = (W2^T diag(w3)) @ (1 - h2^2).
    w2sT = (w3.reshape(hd, 1).astype(f32) * w2f).T         # (HD, HD)
    # Fold the symplectic permutation/sign flip into the last weight.
    w1oT = jnp.concatenate([-w1f[:, half:], w1f[:, :half]], axis=1).T   # (D, HD)

    # One-time wrapper transpose: batch on lanes inside the kernel.
    xT = (jnp.pad(x, ((0, n_pad - n), (0, 0))) if n_pad != n else x).T  # (D, n_pad)

    # Scoped VMEM: double-buffered x/out tiles + lane-padded intermediates.
    # Only raise the limit for very large tiles (v5e default scoped VMEM = 16 MiB).
    vmem_est = 4 * tile_n * (4 * d_in + 8 * hd)
    vmem_kwargs = {}
    if vmem_est > 12 * 1024 * 1024:
        vmem_kwargs["vmem_limit_bytes"] = int(min(2 * vmem_est, 60 * 1024 * 1024))

    resident = lambda shape: pl.BlockSpec(shape, lambda i: (0,) * len(shape))

    outT = pl.pallas_call(
        _hd_inverse_kernel,
        out_shape=jax.ShapeDtypeStruct((d_in, n_pad), x.dtype),
        grid=grid,
        in_specs=[
            pl.BlockSpec((d_in, tile_n), lambda i: (0, i)),   # x^T, batch-tiled on lanes
            resident((hd, d_in)),                             # w1
            resident((hd, 1)),                                # b1 (column)
            resident((hd, hd)),                               # w2
            resident((hd, 1)),                                # b2 (column)
            resident((hd, hd)),                               # w2sT (w3 folded)
            resident((d_in, hd)),                             # w1oT (permutation folded)
        ],
        out_specs=pl.BlockSpec((d_in, tile_n), lambda i: (0, i)),
        compiler_params=pltpu.CompilerParams(
            dimension_semantics=("parallel",), **vmem_kwargs),
    )(xT, w1f, b1c, w2f, b2c, w2sT, w1oT)

    out = outT.T
    return out[:n] if n_pad != n else out


# ---------------- pure-JAX reference (uses autodiff, like the torch module) --
def _hnet_apply(params, x):
    w1, b1, w2, b2, w3, b3 = params
    h1 = jnp.tanh(x @ w1.T + b1)
    h2 = jnp.tanh(h1 @ w2.T + b2)
    return h2 @ w3.T + b3


def _ref_forward(t, x, params):
    del t
    dH = jax.grad(lambda xx: jnp.sum(_hnet_apply(params, xx)))(x)
    half = x.shape[1] // 2
    dq, dp = dH[:, :half], dH[:, half:]
    return jnp.concatenate([-dp, dq], axis=1)


if __name__ == "__main__":
    key = jax.random.PRNGKey(0)
    k_x, k_w1, k_b1, k_w2, k_b2, k_w3, k_b3 = jax.random.split(key, 7)

    # batch exercises padding (300 -> 512) and a 2-step lane-dense grid.
    N, D, HD = 300, 32, 64

    x = jax.random.normal(k_x, (N, D), dtype=jnp.float32)
    t = jnp.float32(0.0)  # unused by forward

    scale = 0.2
    params = (
        scale * jax.random.normal(k_w1, (HD, D), dtype=jnp.float32),   # w1
        scale * jax.random.normal(k_b1, (HD,), dtype=jnp.float32),     # b1
        scale * jax.random.normal(k_w2, (HD, HD), dtype=jnp.float32),  # w2
        scale * jax.random.normal(k_b2, (HD,), dtype=jnp.float32),     # b2
        scale * jax.random.normal(k_w3, (1, HD), dtype=jnp.float32),   # w3
        scale * jax.random.normal(k_b3, (1,), dtype=jnp.float32),      # b3
    )

    out = hd_inverse_net(t, x, params)   # tile_n clamps to 256 -> grid=(2,)
    out = jax.block_until_ready(out)

    ref = _ref_forward(t, x, params)
    assert out.shape == (N, D)
    assert jnp.allclose(out, ref, atol=2e-5, rtol=2e-5), "mismatch vs autodiff reference"

    print("KERNEL_OK")
</pallas_src>

<mosaic_0001>
module attributes {stable_mosaic.version = 11 : i64} {
  func.func @_hd_inverse_kernel(%arg0: i32, %arg1: memref<32x256xf32, #tpu.memory_space<vmem>>, %arg2: memref<64x32xf32, #tpu.memory_space<vmem>>, %arg3: memref<64x1xf32, #tpu.memory_space<vmem>>, %arg4: memref<64x64xf32, #tpu.memory_space<vmem>>, %arg5: memref<64x1xf32, #tpu.memory_space<vmem>>, %arg6: memref<64x64xf32, #tpu.memory_space<vmem>>, %arg7: memref<32x64xf32, #tpu.memory_space<vmem>>, %arg8: memref<32x256xf32, #tpu.memory_space<vmem>>) attributes {dimension_semantics = [#tpu.dimension_semantics<parallel>], iteration_bounds = array<i64: 2>, scalar_prefetch = 0 : i64, scratch_operands = 0 : i64, tpu.core_type = #tpu.core_type<tc>, window_params = [{transform_indices = @transform_0, window_bounds = array<i64: 32, 256>}, {pipeline_mode = #tpu.pipeline_mode<synchronous>, transform_indices = @transform_1, window_bounds = array<i64: 64, 32>}, {pipeline_mode = #tpu.pipeline_mode<synchronous>, transform_indices = @transform_2, window_bounds = array<i64: 64, 1>}, {pipeline_mode = #tpu.pipeline_mode<synchronous>, transform_indices = @transform_3, window_bounds = array<i64: 64, 64>}, {pipeline_mode = #tpu.pipeline_mode<synchronous>, transform_indices = @transform_4, window_bounds = array<i64: 64, 1>}, {pipeline_mode = #tpu.pipeline_mode<synchronous>, transform_indices = @transform_5, window_bounds = array<i64: 64, 64>}, {pipeline_mode = #tpu.pipeline_mode<synchronous>, transform_indices = @transform_6, window_bounds = array<i64: 32, 64>}, {transform_indices = @transform_7, window_bounds = array<i64: 32, 256>}]} {
    %c0 = arith.constant 0 : index
    %c0_0 = arith.constant 0 : index
    %0 = vector.load %arg2[%c0, %c0_0] : memref<64x32xf32, #tpu.memory_space<vmem>>, vector<64x32xf32>
    %c0_1 = arith.constant 0 : index
    %c0_2 = arith.constant 0 : index
    %1 = vector.load %arg3[%c0_1, %c0_2] : memref<64x1xf32, #tpu.memory_space<vmem>>, vector<64x1xf32>
    %c0_3 = arith.constant 0 : index
    %c0_4 = arith.constant 0 : index
    %2 = vector.load %arg4[%c0_3, %c0_4] : memref<64x64xf32, #tpu.memory_space<vmem>>, vector<64x64xf32>
    %c0_5 = arith.constant 0 : index
    %c0_6 = arith.constant 0 : index
    %3 = vector.load %arg5[%c0_5, %c0_6] : memref<64x1xf32, #tpu.memory_space<vmem>>, vector<64x1xf32>
    %c0_7 = arith.constant 0 : index
    %c0_8 = arith.constant 0 : index
    %4 = vector.load %arg6[%c0_7, %c0_8] : memref<64x64xf32, #tpu.memory_space<vmem>>, vector<64x64xf32>
    %c0_9 = arith.constant 0 : index
    %c0_10 = arith.constant 0 : index
    %5 = vector.load %arg7[%c0_9, %c0_10] : memref<32x64xf32, #tpu.memory_space<vmem>>, vector<32x64xf32>
    %c0_11 = arith.constant 0 : index
    %c0_12 = arith.constant 0 : index
    %6 = vector.load %arg1[%c0_11, %c0_12] : memref<32x256xf32, #tpu.memory_space<vmem>>, vector<32x256xf32>
    %cst = arith.constant dense<0.000000e+00> : vector<64x256xf32>
    %7 = tpu.matmul %0, %6, %cst {dimension_numbers = #tpu.dot_dimension_numbers<[1], [0], [0], [1], [0, 0, 1, 1], [], []>} : vector<64x32xf32>, vector<32x256xf32>, vector<64x256xf32> -> vector<64x256xf32>
    %8 = vector.broadcast %1 : vector<64x1xf32> to vector<64x256xf32>
    %9 = arith.addf %7, %8 : vector<64x256xf32>
    %10 = math.tanh %9 : vector<64x256xf32>
    %cst_13 = arith.constant dense<0.000000e+00> : vector<64x256xf32>
    %11 = tpu.matmul %2, %10, %cst_13 {dimension_numbers = #tpu.dot_dimension_numbers<[1], [0], [0], [1], [0, 0, 1, 1], [], []>} : vector<64x64xf32>, vector<64x256xf32>, vector<64x256xf32> -> vector<64x256xf32>
    %12 = vector.broadcast %3 : vector<64x1xf32> to vector<64x256xf32>
    %13 = arith.addf %11, %12 : vector<64x256xf32>
    %14 = math.tanh %13 : vector<64x256xf32>
    %15 = arith.mulf %14, %14 : vector<64x256xf32>
    %cst_14 = arith.constant 1.000000e+00 : f32
    %16 = vector.broadcast %cst_14 : f32 to vector<64x256xf32>
    %17 = arith.subf %16, %15 : vector<64x256xf32>
    %cst_15 = arith.constant dense<0.000000e+00> : vector<64x256xf32>
    %18 = tpu.matmul %4, %17, %cst_15 {dimension_numbers = #tpu.dot_dimension_numbers<[1], [0], [0], [1], [0, 0, 1, 1], [], []>} : vector<64x64xf32>, vector<64x256xf32>, vector<64x256xf32> -> vector<64x256xf32>
    %19 = arith.mulf %10, %10 : vector<64x256xf32>
    %cst_16 = arith.constant 1.000000e+00 : f32
    %20 = vector.broadcast %cst_16 : f32 to vector<64x256xf32>
    %21 = arith.subf %20, %19 : vector<64x256xf32>
    %22 = arith.mulf %18, %21 : vector<64x256xf32>
    %cst_17 = arith.constant dense<0.000000e+00> : vector<32x256xf32>
    %23 = tpu.matmul %5, %22, %cst_17 {dimension_numbers = #tpu.dot_dimension_numbers<[1], [0], [0], [1], [0, 0, 1, 1], [], []>} : vector<32x64xf32>, vector<64x256xf32>, vector<32x256xf32> -> vector<32x256xf32>
    %c0_18 = arith.constant 0 : index
    %c0_19 = arith.constant 0 : index
    %24 = vector.load %arg8[%c0_18, %c0_19] : memref<32x256xf32, #tpu.memory_space<vmem>>, vector<32x256xf32>
    tpu.vector_store %arg8[%c0_18, %c0_19], %23 {strides = array<i32>} : memref<32x256xf32, #tpu.memory_space<vmem>>, vector<32x256xf32>,
    return
  }
  func.func @transform_0(%arg0: i32) -> (i32, i32) {
    %c0_i32 = arith.constant 0 : i32
    %c0_i32_0 = arith.constant 0 : i32
    return %c0_i32, %arg0 : i32, i32
  }
  func.func @transform_1(%arg0: i32) -> (i32, i32) {
    %c0_i32 = arith.constant 0 : i32
    %c0_i32_0 = arith.constant 0 : i32
    %c0_i32_1 = arith.constant 0 : i32
    return %c0_i32, %c0_i32_0 : i32, i32
  }
  func.func @transform_2(%arg0: i32) -> (i32, i32) {
    %c0_i32 = arith.constant 0 : i32
    %c0_i32_0 = arith.constant 0 : i32
    %c0_i32_1 = arith.constant 0 : i32
    return %c0_i32, %c0_i32_0 : i32, i32
  }
  func.func @transform_3(%arg0: i32) -> (i32, i32) {
    %c0_i32 = arith.constant 0 : i32
    %c0_i32_0 = arith.constant 0 : i32
    %c0_i32_1 = arith.constant 0 : i32
    return %c0_i32, %c0_i32_0 : i32, i32
  }
  func.func @transform_4(%arg0: i32) -> (i32, i32) {
    %c0_i32 = arith.constant 0 : i32
    %c0_i32_0 = arith.constant 0 : i32
    %c0_i32_1 = arith.constant 0 : i32
    return %c0_i32, %c0_i32_0 : i32, i32
  }
  func.func @transform_5(%arg0: i32) -> (i32, i32) {
    %c0_i32 = arith.constant 0 : i32
    %c0_i32_0 = arith.constant 0 : i32
    %c0_i32_1 = arith.constant 0 : i32
    return %c0_i32, %c0_i32_0 : i32, i32
  }
  func.func @transform_6(%arg0: i32) -> (i32, i32) {
    %c0_i32 = arith.constant 0 : i32
    %c0_i32_0 = arith.constant 0 : i32
    %c0_i32_1 = arith.constant 0 : i32
    return %c0_i32, %c0_i32_0 : i32, i32
  }
  func.func @transform_7(%arg0: i32) -> (i32, i32) {
    %c0_i32 = arith.constant 0 : i32
    %c0_i32_0 = arith.constant 0 : i32
    return %c0_i32, %arg0 : i32, i32
  }
}

</mosaic_0001>

<llo_original>
// kernel: tpu_custom_call.1
$region0: #{tpu_custom_call.1}
  #allocation0 [shape = 'u32[]', space=smem, size = 0x4, offset = 0x4, fixed_abs, tag = 'smem constant byte address 0x4 - core index']
  #allocation1 [shape = 'u32[72,128]{1,0:T(1,128)}', space=vmem, size = 0x9000, scoped, tag = 'internal scratch']
  %s0 = inlined_call_operand.vmem [shape: f32[32,512], index: 0, kind: input, shape index: {}]
  %s1 = inlined_call_operand.vmem [shape: f32[64,32], index: 1, kind: input, shape index: {}]
  %s2 = inlined_call_operand.vmem [shape: f32[64,1], index: 2, kind: input, shape index: {}]
  %s3 = inlined_call_operand.vmem [shape: f32[64,64], index: 3, kind: input, shape index: {}]
  %s4 = inlined_call_operand.vmem [shape: f32[64,1], index: 4, kind: input, shape index: {}]
  %s5 = inlined_call_operand.hbm [shape: f32[64,64], index: 5, kind: input, shape index: {}]
  %s6 = inlined_call_operand.vmem [shape: f32[32,64], index: 6, kind: input, shape index: {}]
  %s7 = inlined_call_operand.hbm [shape: f32[32,512], index: 7, kind: output, shape index: {}]
  %s8 = sld [smem:[#allocation0]]
  $region88: #{tpu_custom_call.1} parent=0
    _
  %s10 = ssub.s32 1, %s8
  %s11 = scalar_select 0, %s10, %s8
  $region1: #{tpu_custom_call.1} parent=0
    #allocation2 [shape = 'u8[65536]{0}', space=vmem, size = 0x10000, scoped, tag = 'input window, operand 0']
    #allocation3 [shape = 'u8[32768]{0}', space=vmem, size = 0x8000, scoped, tag = 'input window, operand 5, single buffered']
    #allocation4 [shape = 's32[2]{0}', space=sflag, size = 0x8, scoped, tag = 'scoped memory for tpu_custom_call.1']
    #allocation5 [shape = 's32[2]{0}', space=sflag, size = 0x8, scoped, tag = 'scoped memory for tpu_custom_call.1']
    #allocation6 [shape = 'u8[65536]{0}', space=vmem, size = 0x10000, scoped, tag = 'output window, operand 0']
    %12 = vsyncpa [#allocation4], 0
    %13 = vsyncpa [#allocation5], 0
    %s14 = scalar_lea.sflag [#allocation5], 1
    %15 = vsyncpa %s14, 0
    loop: start=0, step=1, limit=4
    $region2: #{tpu_custom_call.1} parent=1 // loop_pre_header
      _
    $region3: #{tpu_custom_call.1} parent=1 // loop_header
      %s17 = sphi 0, %s21
      %p18 = scmp.ge.s32.totalorder %s17, 4
      %s27 = sphi 0, %s29
      %s30 = sphi 0, %s27
      %s31 = sphi 0, %s30
      %s47 = sphi 0, %s31
      %s51 = sphi 0, %s51
      %s53 = sphi 0, %s51
      %s54 = sphi 0, %s53
      %s68 = sphi 0, %s54
      %s72 = sphi 0, %s72
      %s74 = sphi 0, %s72
      %s75 = sphi 0, %s74
      %s89 = sphi 0, %s75
      %s93 = sphi 0, %s93
      %s95 = sphi 0, %s93
      %s96 = sphi 0, %s95
      %s110 = sphi 0, %s96
      %s114 = sphi 0, %s114
      %s116 = sphi 0, %s114
      %s117 = sphi 0, %s116
      %s131 = sphi 0, %s117
      %s135 = sphi 0, %s135
      %s137 = sphi 0, %s135
      %s138 = sphi 0, %s137
      %s152 = sphi 0, %s138
      %s156 = sphi 0, %s156
      %s158 = sphi 0, %s156
      %s159 = sphi 0, %s158
      %s173 = sphi 0, %s159
      %s179 = sphi 0, %s181
      %s182 = sphi 0, %s179
      %s183 = sphi 0, %s182
      %s199 = sphi 0, %s183
    $region4: #{tpu_custom_call.1} parent=1 // loop_header_branch
      %20 = sbr.rel (%p18) target = $region8
    $region5: #{tpu_custom_call.1} parent=1 // loop_body
      %s22 = ssub.s32 %s17, 1
      %s23 = ssub.s32 %s17, 2
      %s24 = sadd.s32 %s17, 1
      %s25 = ssub.s32 %s17, %s24
      %p26 = scmp.eq.s32.totalorder %s25, 0
      %s28 = sadd.s32 %s27, 1
      %s29 = scalar_select %p26, %s27, %s28
      %p32 = pneg %p26
      %p33 = scmp.eq.s32.totalorder %s17, 1
      %p34 = por %p32, %p33
      %p35 = scmp.ne.s32.totalorder %s27, %s30
      %p36 = scmp.eq.s32.totalorder %s17, 0
      %p37 = por %p35, %p36
      %p38 = scmp.ne.s32.totalorder %s27, %s30
      %p39 = scmp.eq.s32.totalorder %s22, 1
      %p40 = por %p38, %p39
      %p41 = scmp.ne.s32.totalorder %s30, %s31
      %p42 = scmp.eq.s32.totalorder %s22, 0
      %p43 = por %p41, %p42
      %p44 = scmp.ne.s32.totalorder %s30, %s31
      %p45 = scmp.eq.s32.totalorder %s23, 1
      %p46 = por %p44, %p45
      %p48 = scmp.ne.s32.totalorder %s31, %s47
      %p49 = scmp.eq.s32.totalorder %s23, 0
      %p50 = por %p48, %p49
      %s52 = sadd.s32 %s51, 1
      %p55 = scmp.eq.s32.totalorder %s17, 1
      %p56 = scmp.ne.s32.totalorder %s51, %s53
      %p57 = scmp.eq.s32.totalorder %s17, 0
      %p58 = por %p56, %p57
      %p59 = scmp.ne.s32.totalorder %s51, %s53
      %p60 = scmp.eq.s32.totalorder %s22, 1
      %p61 = por %p59, %p60
      %p62 = scmp.ne.s32.totalorder %s53, %s54
      %p63 = scmp.eq.s32.totalorder %s22, 0
      %p64 = por %p62, %p63
      %p65 = scmp.ne.s32.totalorder %s53, %s54
      %p66 = scmp.eq.s32.totalorder %s23, 1
      %p67 = por %p65, %p66
      %p69 = scmp.ne.s32.totalorder %s54, %s68
      %p70 = scmp.eq.s32.totalorder %s23, 0
      %p71 = por %p69, %p70
      %s73 = sadd.s32 %s72, 1
      %p76 = scmp.eq.s32.totalorder %s17, 1
      %p77 = scmp.ne.s32.totalorder %s72, %s74
      %p78 = scmp.eq.s32.totalorder %s17, 0
      %p79 = por %p77, %p78
      %p80 = scmp.ne.s32.totalorder %s72, %s74
      %p81 = scmp.eq.s32.totalorder %s22, 1
      %p82 = por %p80, %p81
      %p83 = scmp.ne.s32.totalorder %s74, %s75
      %p84 = scmp.eq.s32.totalorder %s22, 0
      %p85 = por %p83, %p84
      %p86 = scmp.ne.s32.totalorder %s74, %s75
      %p87 = scmp.eq.s32.totalorder %s23, 1
      %p88 = por %p86, %p87
      %p90 = scmp.ne.s32.totalorder %s75, %s89
      %p91 = scmp.eq.s32.totalorder %s23, 0
      %p92 = por %p90, %p91
      %s94 = sadd.s32 %s93, 1
      %p97 = scmp.eq.s32.totalorder %s17, 1
      %p98 = scmp.ne.s32.totalorder %s93, %s95
      %p99 = scmp.eq.s32.totalorder %s17, 0
      %p100 = por %p98, %p99
      %p101 = scmp.ne.s32.totalorder %s93, %s95
      %p102 = scmp.eq.s32.totalorder %s22, 1
      %p103 = por %p101, %p102
      %p104 = scmp.ne.s32.totalorder %s95, %s96
      %p105 = scmp.eq.s32.totalorder %s22, 0
      %p106 = por %p104, %p105
      %p107 = scmp.ne.s32.totalorder %s95, %s96
      %p108 = scmp.eq.s32.totalorder %s23, 1
      %p109 = por %p107, %p108
      %p111 = scmp.ne.s32.totalorder %s96, %s110
      %p112 = scmp.eq.s32.totalorder %s23, 0
      %p113 = por %p111, %p112
      %s115 = sadd.s32 %s114, 1
      %p118 = scmp.eq.s32.totalorder %s17, 1
      %p119 = scmp.ne.s32.totalorder %s114, %s116
      %p120 = scmp.eq.s32.totalorder %s17, 0
      %p121 = por %p119, %p120
      %p122 = scmp.ne.s32.totalorder %s114, %s116
      %p123 = scmp.eq.s32.totalorder %s22, 1
      %p124 = por %p122, %p123
      %p125 = scmp.ne.s32.totalorder %s116, %s117
      %p126 = scmp.eq.s32.totalorder %s22, 0
      %p127 = por %p125, %p126
      %p128 = scmp.ne.s32.totalorder %s116, %s117
      %p129 = scmp.eq.s32.totalorder %s23, 1
      %p130 = por %p128, %p129
      %p132 = scmp.ne.s32.totalorder %s117, %s131
      %p133 = scmp.eq.s32.totalorder %s23, 0
      %p134 = por %p132, %p133
      %s136 = sadd.s32 %s135, 1
      %p139 = scmp.eq.s32.totalorder %s17, 1
      %p140 = scmp.ne.s32.totalorder %s135, %s137
      %p141 = scmp.eq.s32.totalorder %s17, 0
      %p142 = por %p140, %p141
      %p143 = scmp.ne.s32.totalorder %s135, %s137
      %p144 = scmp.eq.s32.totalorder %s22, 1
      %p145 = por %p143, %p144
      %p146 = scmp.ne.s32.totalorder %s137, %s138
      %p147 = scmp.eq.s32.totalorder %s22, 0
      %p148 = por %p146, %p147
      %p149 = scmp.ne.s32.totalorder %s137, %s138
      %p150 = scmp.eq.s32.totalorder %s23, 1
      %p151 = por %p149, %p150
      %p153 = scmp.ne.s32.totalorder %s138, %s152
      %p154 = scmp.eq.s32.totalorder %s23, 0
      %p155 = por %p153, %p154
      %s157 = sadd.s32 %s156, 1
      %p160 = scmp.eq.s32.totalorder %s17, 1
      %p161 = scmp.ne.s32.totalorder %s156, %s158
      %p162 = scmp.eq.s32.totalorder %s17, 0
      %p163 = por %p161, %p162
      %p164 = scmp.ne.s32.totalorder %s156, %s158
      %p165 = scmp.eq.s32.totalorder %s22, 1
      %p166 = por %p164, %p165
      %p167 = scmp.ne.s32.totalorder %s158, %s159
      %p168 = scmp.eq.s32.totalorder %s22, 0
      %p169 = por %p167, %p168
      %p170 = scmp.ne.s32.totalorder %s158, %s159
      %p171 = scmp.eq.s32.totalorder %s23, 1
      %p172 = por %p170, %p171
      %p174 = scmp.ne.s32.totalorder %s159, %s173
      %p175 = scmp.eq.s32.totalorder %s23, 0
      %p176 = por %p174, %p175
      %s177 = ssub.s32 %s17, %s24
      %p178 = scmp.eq.s32.totalorder %s177, 0
      %s180 = sadd.s32 %s179, 1
      %s181 = scalar_select %p178, %s179, %s180
      %p184 = pneg %p178
      %p185 = scmp.eq.s32.totalorder %s17, 1
      %p186 = por %p184, %p185
      %p187 = scmp.ne.s32.totalorder %s179, %s182
      %p188 = scmp.eq.s32.totalorder %s17, 0
      %p189 = por %p187, %p188
      %p190 = scmp.ne.s32.totalorder %s179, %s182
      %p191 = scmp.eq.s32.totalorder %s22, 1
      %p192 = por %p190, %p191
      %p193 = scmp.ne.s32.totalorder %s182, %s183
      %p194 = scmp.eq.s32.totalorder %s22, 0
      %p195 = por %p193, %p194
      %p196 = scmp.ne.s32.totalorder %s182, %s183
      %p197 = scmp.eq.s32.totalorder %s23, 1
      %p198 = por %p196, %p197
      %p200 = scmp.ne.s32.totalorder %s183, %s199
      %p201 = scmp.eq.s32.totalorder %s23, 0
      %p202 = por %p200, %p201
      %p203 = scmp.le.s32.totalorder 1, %s17
      %p204 = scmp.lt.s32.totalorder %s17, 3
      %p205 = pnand %p203, %p204
      %p206 = pneg %p205
      // Predicated region
      $region9: #{tpu_custom_call.1} parent=5 // pred_check
        _
      $region10: #{tpu_custom_call.1} parent=5 // pred_check_branch
        %208 = sbr.rel (%p205) target = $region12
      $region11: #{tpu_custom_call.1} parent=5 // pred_region
        %s209 = ssub.s32 %s17, 1
        // Predicated region
        $region13: #{tpu_custom_call.1} parent=11 // pred_check
          %p210 = pneg %p64
        $region14: #{tpu_custom_call.1} parent=11 // pred_check_branch
          %212 = sbr.rel (%p210) target = $region16
        $region15: #{tpu_custom_call.1} parent=11 // pred_region
          _
        $region16: #{tpu_custom_call.1} parent=11 // pred_fallthru
          _
        // Predicated region
        $region17: #{tpu_custom_call.1} parent=11 // pred_check
          %p213 = pneg %p85
        $region18: #{tpu_custom_call.1} parent=11 // pred_check_branch
          %215 = sbr.rel (%p213) target = $region20
        $region19: #{tpu_custom_call.1} parent=11 // pred_region
          _
        $region20: #{tpu_custom_call.1} parent=11 // pred_fallthru
          _
        // Predicated region
        $region21: #{tpu_custom_call.1} parent=11 // pred_check
          %p216 = pneg %p106
        $region22: #{tpu_custom_call.1} parent=11 // pred_check_branch
          %218 = sbr.rel (%p216) target = $region24
        $region23: #{tpu_custom_call.1} parent=11 // pred_region
          _
        $region24: #{tpu_custom_call.1} parent=11 // pred_fallthru
          _
        // Predicated region
        $region25: #{tpu_custom_call.1} parent=11 // pred_check
          %p219 = pneg %p127
        $region26: #{tpu_custom_call.1} parent=11 // pred_check_branch
          %221 = sbr.rel (%p219) target = $region28
        $region27: #{tpu_custom_call.1} parent=11 // pred_region
          _
        $region28: #{tpu_custom_call.1} parent=11 // pred_fallthru
          _
        // Predicated region
        $region29: #{tpu_custom_call.1} parent=11 // pred_check
          %p222 = pneg %p148
        $region30: #{tpu_custom_call.1} parent=11 // pred_check_branch
          %224 = sbr.rel (%p222) target = $region32
        $region31: #{tpu_custom_call.1} parent=11 // pred_region
          %226 = vsyncadd [#allocation4], 0
          %s227 = sshll.u32 %s5, 4
          %s228 = int_to_ptr.hbm [resolvable:$true] %s227
          %s229 = sshll.u32 [#allocation3], 4
          %s230 = int_to_ptr.vmem [resolvable:$true] %s229
          %235 = dma.hbm_to_vmem [thread:$0]  %s228, 1024, %s230, [#allocation4], 128, 128, 8
        $region32: #{tpu_custom_call.1} parent=11 // pred_fallthru
          _
        // Predicated region
        $region33: #{tpu_custom_call.1} parent=11 // pred_check
          %p236 = pneg %p169
        $region34: #{tpu_custom_call.1} parent=11 // pred_check_branch
          %238 = sbr.rel (%p236) target = $region36
        $region35: #{tpu_custom_call.1} parent=11 // pred_region
          _
        $region36: #{tpu_custom_call.1} parent=11 // pred_fallthru
          _
      $region12: #{tpu_custom_call.1} parent=5 // pred_fallthru
        _
      %p239 = scmp.lt.s32.totalorder %s17, 2
      // Predicated region
      $region37: #{tpu_custom_call.1} parent=5 // pred_check
        %p240 = pneg %p239
      $region38: #{tpu_custom_call.1} parent=5 // pred_check_branch
        %242 = sbr.rel (%p240) target = $region40
      $region39: #{tpu_custom_call.1} parent=5 // pred_region
        // Predicated region
        $region41: #{tpu_custom_call.1} parent=39 // pred_check
          %p243 = pneg %p37
        $region42: #{tpu_custom_call.1} parent=39 // pred_check_branch
          %245 = sbr.rel (%p243) target = $region44
        $region43: #{tpu_custom_call.1} parent=39 // pred_region
          %s246 = sand.u32 %s27, 1
          %s247 = sand.u32 %s27, 1
          %s248 = smul.addr %s247, 64
          %s249 = scalar_lea.vmem [#allocation2], %s248
          %s250 = smul.u32 2, %s17
          %s251 = smul.addr %s250, 8
          %s252 = scalar_lea.vmem %s0, %s251
          // Predicated region
          $region45: #{tpu_custom_call.1} parent=43 // pred_check
            _
          $region46: #{tpu_custom_call.1} parent=43 // pred_check_branch
            %254 = sbr.rel (0) target = $region48
          $region47: #{tpu_custom_call.1} parent=43 // pred_region
            // Predicated region
            $region49: #{tpu_custom_call.1} parent=47 // pred_check
              _
            $region50: #{tpu_custom_call.1} parent=47 // pred_check_branch
              %256 = sbr.rel (0) target = $region52
            $region51: #{tpu_custom_call.1} parent=47 // pred_region
              loop: start=0, step=1, limit=1
              $region53: #{tpu_custom_call.1} parent=51 // loop_pre_header
                _
              $region54: #{tpu_custom_call.1} parent=51 // loop_header
                %s258 = sphi 0, %s262
                %p259 = scmp.ge.s32.totalorder %s258, 1
                %s263 = sphi %s252, %s252
                %s264 = sphi %s249, %s249
              $region55: #{tpu_custom_call.1} parent=51 // loop_header_branch
                %261 = sbr.rel (%p259) target = $region59
              $region56: #{tpu_custom_call.1} parent=51 // loop_body
                %v265 = vld [vmem:[%s263] sm:$0xff]
                %266 = vst [vmem:[%s264] sm:$0xff] %v265
                %v267 = vld [vmem:[%s263 + $0x8] sm:$0xff]
                %268 = vst [vmem:[%s264 + $0x8] sm:$0xff] %v267
                %v269 = vld [vmem:[%s263 + $0x20] sm:$0xff]
                %270 = vst [vmem:[%s264 + $0x10] sm:$0xff] %v269
                %v271 = vld [vmem:[%s263 + $0x28] sm:$0xff]
                %272 = vst [vmem:[%s264 + $0x18] sm:$0xff] %v271
                %v273 = vld [vmem:[%s263 + $0x40] sm:$0xff]
                %274 = vst [vmem:[%s264 + $0x20] sm:$0xff] %v273
                %v275 = vld [vmem:[%s263 + $0x48] sm:$0xff]
                %276 = vst [vmem:[%s264 + $0x28] sm:$0xff] %v275
                %v277 = vld [vmem:[%s263 + $0x60] sm:$0xff]
                %278 = vst [vmem:[%s264 + $0x30] sm:$0xff] %v277
                %v279 = vld [vmem:[%s263 + $0x68] sm:$0xff]
                %280 = vst [vmem:[%s264 + $0x38] sm:$0xff] %v279
              $region57: #{tpu_custom_call.1} parent=51 // loop_footer
                %s262 = sadd.s32 1, %s258
              $region58: #{tpu_custom_call.1} parent=51 // loop_footer_branch
                %257 = sbr.rel target = $region54
              $region59: #{tpu_custom_call.1} parent=51 // loop_exit
                _
            $region52: #{tpu_custom_call.1} parent=47 // pred_fallthru
              _
            // Predicated region
            $region60: #{tpu_custom_call.1} parent=47 // pred_check
              _
            $region61: #{tpu_custom_call.1} parent=47 // pred_check_branch
              %282 = sbr.rel target = $region63
            $region62: #{tpu_custom_call.1} parent=47 // pred_region
              _
            $region63: #{tpu_custom_call.1} parent=47 // pred_fallthru
              _
          $region48: #{tpu_custom_call.1} parent=43 // pred_fallthru
            _
          %283 = vnop
        $region44: #{tpu_custom_call.1} parent=39 // pred_fallthru
          _
      $region40: #{tpu_custom_call.1} parent=5 // pred_fallthru
        _
      %p284 = scmp.le.s32.totalorder 1, %s17
      %p285 = scmp.lt.s32.totalorder %s17, 3
      %p286 = pnand %p284, %p285
      %p287 = pneg %p286
      // Predicated region
      $region64: #{tpu_custom_call.1} parent=5 // pred_check
        _
      $region65: #{tpu_custom_call.1} parent=5 // pred_check_branch
        %289 = sbr.rel (%p286) target = $region67
      $region66: #{tpu_custom_call.1} parent=5 // pred_region
        %s290 = ssub.s32 %s17, 1
        %s291 = sand.u32 %s30, 1
        %s292 = sand.u32 %s30, 1
        %s293 = smul.addr %s292, 64
        %s294 = scalar_lea.vmem [#allocation2], %s293
        // Predicated region
        $region68: #{tpu_custom_call.1} parent=66 // pred_check
          %p295 = pneg %p43
        $region69: #{tpu_custom_call.1} parent=66 // pred_check_branch
          %297 = sbr.rel (%p295) target = $region71
        $region70: #{tpu_custom_call.1} parent=66 // pred_region
          _
        $region71: #{tpu_custom_call.1} parent=66 // pred_fallthru
          _
        // Predicated region
        $region72: #{tpu_custom_call.1} parent=66 // pred_check
          %p298 = pneg %p148
        $region73: #{tpu_custom_call.1} parent=66 // pred_check_branch
          %300 = sbr.rel (%p298) target = $region75
        $region74: #{tpu_custom_call.1} parent=66 // pred_region
          %302 = dma.done [#allocation4], 1024
        $region75: #{tpu_custom_call.1} parent=66 // pred_fallthru
          _
        %s303 = sand.u32 %s30, 1
        %s304 = sand.u32 %s30, 1
        %s305 = smul.addr %s304, 64
        %s306 = scalar_lea.vmem [#allocation2], %s305
        %p307 = pneg %p43
        %p308 = pneg %p40
        %p309 = pneg %p64
        %p310 = pneg %p61
        %p311 = pneg %p85
        %p312 = pneg %p82
        %p313 = pneg %p106
        %p314 = pneg %p103
        %p315 = pneg %p127
        %p316 = pneg %p124
        %p317 = pneg %p148
        %p318 = pneg %p145
        %p319 = pneg %p169
        %p320 = pneg %p166
        %p321 = pneg %p195
        %p322 = pneg %p192
        %s323 = sand.u32 %s182, 1
        %s324 = scalar_lea.sflag [#allocation5], %s323
        %s325 = sand.u32 %s182, 1
        %s326 = smul.addr %s325, 64
        %s327 = scalar_lea.vmem [#allocation6], %s326
        %s328 = smul.u32 2, %s22
        %s329 = smul.u32 2, %s22
        %v330 = vld [vmem:[%s1] sm:$0xff]
        %v331 = vld [vmem:[%s1 + $0x8] sm:$0xff]
        %v332 = vld [vmem:[%s1 + $0x10] sm:$0xff]
        %v333 = vld [vmem:[%s1 + $0x18] sm:$0xff]
        %v334 = vld [vmem:[%s1 + $0x20] sm:$0xff]
        %v335 = vld [vmem:[%s1 + $0x28] sm:$0xff]
        %v336 = vld [vmem:[%s1 + $0x30] sm:$0xff]
        %v337 = vld [vmem:[%s1 + $0x38] sm:$0xff]
        %v338 = vld [vmem:[%s2] sm:$0xff]
        %v339 = vld [vmem:[%s2 + $0x8] sm:$0xff]
        %v340 = vld [vmem:[%s2 + $0x10] sm:$0xff]
        %v341 = vld [vmem:[%s2 + $0x18] sm:$0xff]
        %v342 = vld [vmem:[%s2 + $0x20] sm:$0xff]
        %v343 = vld [vmem:[%s2 + $0x28] sm:$0xff]
        %v344 = vld [vmem:[%s2 + $0x30] sm:$0xff]
        %v345 = vld [vmem:[%s2 + $0x38] sm:$0xff]
        %v346 = vld [vmem:[%s3] sm:$0xff]
        %v347 = vld [vmem:[%s3 + $0x8] sm:$0xff]
        %v348 = vld [vmem:[%s3 + $0x10] sm:$0xff]
        %v349 = vld [vmem:[%s3 + $0x18] sm:$0xff]
        %v350 = vld [vmem:[%s3 + $0x20] sm:$0xff]
        %v351 = vld [vmem:[%s3 + $0x28] sm:$0xff]
        %v352 = vld [vmem:[%s3 + $0x30] sm:$0xff]
        %v353 = vld [vmem:[%s3 + $0x38] sm:$0xff]
        %v354 = vld [vmem:[%s4] sm:$0xff]
        %v355 = vld [vmem:[%s4 + $0x8] sm:$0xff]
        %v356 = vld [vmem:[%s4 + $0x10] sm:$0xff]
        %v357 = vld [vmem:[%s4 + $0x18] sm:$0xff]
        %v358 = vld [vmem:[%s4 + $0x20] sm:$0xff]
        %v359 = vld [vmem:[%s4 + $0x28] sm:$0xff]
        %v360 = vld [vmem:[%s4 + $0x30] sm:$0xff]
        %v361 = vld [vmem:[%s4 + $0x38] sm:$0xff]
        %v362 = vld [vmem:[#allocation3] sm:$0xff]
        %v363 = vld [vmem:[#allocation3 + $0x8] sm:$0xff]
        %v364 = vld [vmem:[#allocation3 + $0x10] sm:$0xff]
        %v365 = vld [vmem:[#allocation3 + $0x18] sm:$0xff]
        %v366 = vld [vmem:[#allocation3 + $0x20] sm:$0xff]
        %v367 = vld [vmem:[#allocation3 + $0x28] sm:$0xff]
        %v368 = vld [vmem:[#allocation3 + $0x30] sm:$0xff]
        %v369 = vld [vmem:[#allocation3 + $0x38] sm:$0xff]
        %v370 = vld [vmem:[%s6] sm:$0xff]
        %v371 = vld [vmem:[%s6 + $0x8] sm:$0xff]
        %v372 = vld [vmem:[%s6 + $0x10] sm:$0xff]
        %v373 = vld [vmem:[%s6 + $0x18] sm:$0xff]
        %v374 = vld [vmem:[%s294] sm:$0xff]
        %v375 = vld [vmem:[%s294 + $0x8] sm:$0xff]
        %v376 = vld [vmem:[%s294 + $0x10] sm:$0xff]
        %v377 = vld [vmem:[%s294 + $0x18] sm:$0xff]
        %v378 = vld [vmem:[%s294 + $0x20] sm:$0xff]
        %v379 = vld [vmem:[%s294 + $0x28] sm:$0xff]
        %v380 = vld [vmem:[%s294 + $0x30] sm:$0xff]
        %v381 = vld [vmem:[%s294 + $0x38] sm:$0xff]
        %383 = vset.pattern.permute.xlu0 0
        %384 = vperm.xlu0 %383, %v338
        %v385 = vpop.permute.xlu0 %384
        %388 = vset.pattern.permute.xlu0 0
        %389 = vperm.xlu0 %388, %v339
        %v390 = vpop.permute.xlu0 %389
        %393 = vset.pattern.permute.xlu0 0
        %394 = vperm.xlu0 %393, %v340
        %v395 = vpop.permute.xlu0 %394
        %398 = vset.pattern.permute.xlu0 0
        %399 = vperm.xlu0 %398, %v341
        %v400 = vpop.permute.xlu0 %399
        %403 = vset.pattern.permute.xlu0 0
        %404 = vperm.xlu0 %403, %v342
        %v405 = vpop.permute.xlu0 %404
        %408 = vset.pattern.permute.xlu0 0
        %409 = vperm.xlu0 %408, %v343
        %v410 = vpop.permute.xlu0 %409
        %413 = vset.pattern.permute.xlu0 0
        %414 = vperm.xlu0 %413, %v344
        %v415 = vpop.permute.xlu0 %414
        %418 = vset.pattern.permute.xlu0 0
        %419 = vperm.xlu0 %418, %v345
        %v420 = vpop.permute.xlu0 %419
        %vm422 = vcmask 261120
        %v424 = vsel %vm422, %v330, 0
        %v427 = vsel %vm422, %v331, 0
        %v430 = vsel %vm422, %v332, 0
        %v433 = vsel %vm422, %v333, 0
        %v436 = vsel %vm422, %v334, 0
        %v439 = vsel %vm422, %v335, 0
        %v442 = vsel %vm422, %v336, 0
        %v445 = vsel %vm422, %v337, 0
        %447 = vmatpush.msra.mxu0 0.0
        %448 = vmatpush.msra.mxu0 0.0
        %449 = vmatpush.msra.mxu0 0.0
        %450 = vmatpush.msra.mxu0 0.0
        %451 = vmatpush.msra.mxu0 0.0
        %452 = vmatpush.msra.mxu0 0.0
        %453 = vmatpush.msra.mxu0 0.0
        %454 = vmatpush.msra.mxu0 0.0
        %455 = vmatpush.msra.mxu0 0.0
        %456 = vmatpush.msra.mxu0 0.0
        %457 = vmatpush.msra.mxu0 0.0
        %458 = vmatpush.msra.mxu0 0.0
        %459 = vmatpush.msra.mxu0 %v380
        %460 = vmatpush.msra.mxu0 %v378
        %461 = vmatpush.msra.mxu0 %v376
        %462 = vmatpush.msra.mxu0 %v374
        %463 = vmatmul.f32.gmra.mxu0 %v424
        %v464 = vpop.f32.mrf.mxu0
        %v465 = vadd.f32 %v385, %v464
        %466 = vmatmul.f32.gmra.mxu0 %v427
        %v467 = vpop.f32.mrf.mxu0
        %v468 = vadd.f32 %v390, %v467
        %469 = vmatmul.f32.gmra.mxu0 %v430
        %v470 = vpop.f32.mrf.mxu0
        %v471 = vadd.f32 %v395, %v470
        %472 = vmatmul.f32.gmra.mxu0 %v433
        %v473 = vpop.f32.mrf.mxu0
        %v474 = vadd.f32 %v400, %v473
        %475 = vmatmul.f32.gmra.mxu0 %v436
        %v476 = vpop.f32.mrf.mxu0
        %v477 = vadd.f32 %v405, %v476
        %478 = vmatmul.f32.gmra.mxu0 %v439
        %v479 = vpop.f32.mrf.mxu0
        %v480 = vadd.f32 %v410, %v479
        %481 = vmatmul.f32.gmra.mxu0 %v442
        %v482 = vpop.f32.mrf.mxu0
        %v483 = vadd.f32 %v415, %v482
        %484 = vmatmul.f32.gmra.mxu0 %v445
        %v485 = vpop.f32.mrf.mxu0
        %v486 = vadd.f32 %v420, %v485
        %487 = vdwg.mxu0
        %488 = vmatpush.msra.mxu0 0.0
        %489 = vmatpush.msra.mxu0 0.0
        %490 = vmatpush.msra.mxu0 0.0
        %491 = vmatpush.msra.mxu0 0.0
        %492 = vmatpush.msra.mxu0 0.0
        %493 = vmatpush.msra.mxu0 0.0
        %494 = vmatpush.msra.mxu0 0.0
        %495 = vmatpush.msra.mxu0 0.0
        %496 = vmatpush.msra.mxu0 0.0
        %497 = vmatpush.msra.mxu0 0.0
        %498 = vmatpush.msra.mxu0 0.0
        %499 = vmatpush.msra.mxu0 0.0
        %500 = vmatpush.msra.mxu0 %v381
        %501 = vmatpush.msra.mxu0 %v379
        %502 = vmatpush.msra.mxu0 %v377
        %503 = vmatpush.msra.mxu0 %v375
        %504 = vmatmul.f32.gmra.mxu0 %v424
        %v505 = vpop.f32.mrf.mxu0
        %v506 = vadd.f32 %v385, %v505
        %507 = vmatmul.f32.gmra.mxu0 %v427
        %v508 = vpop.f32.mrf.mxu0
        %v509 = vadd.f32 %v390, %v508
        %510 = vmatmul.f32.gmra.mxu0 %v430
        %v511 = vpop.f32.mrf.mxu0
        %v512 = vadd.f32 %v395, %v511
        %513 = vmatmul.f32.gmra.mxu0 %v433
        %v514 = vpop.f32.mrf.mxu0
        %v515 = vadd.f32 %v400, %v514
        %516 = vmatmul.f32.gmra.mxu0 %v436
        %v517 = vpop.f32.mrf.mxu0
        %v518 = vadd.f32 %v405, %v517
        %519 = vmatmul.f32.gmra.mxu0 %v439
        %v520 = vpop.f32.mrf.mxu0
        %v521 = vadd.f32 %v410, %v520
        %522 = vmatmul.f32.gmra.mxu0 %v442
        %v523 = vpop.f32.mrf.mxu0
        %v524 = vadd.f32 %v415, %v523
        %525 = vmatmul.f32.gmra.mxu0 %v445
        %v526 = vpop.f32.mrf.mxu0
        %v527 = vadd.f32 %v420, %v526
        %528 = vdwg.mxu0
        %v529 = vtanh.pop %v465
        %v530 = vtanh.pop %v506
        %v531 = vtanh.pop %v468
        %v532 = vtanh.pop %v509
        %v533 = vtanh.pop %v471
        %v534 = vtanh.pop %v512
        %v535 = vtanh.pop %v474
        %v536 = vtanh.pop %v515
        %v537 = vtanh.pop %v477
        %v538 = vtanh.pop %v518
        %v539 = vtanh.pop %v480
        %v540 = vtanh.pop %v521
        %v541 = vtanh.pop %v483
        %v542 = vtanh.pop %v524
        %v543 = vtanh.pop %v486
        %v544 = vtanh.pop %v527
        %546 = vset.pattern.permute.xlu0 0
        %547 = vperm.xlu0 %546, %v354
        %v548 = vpop.permute.xlu0 %547
        %551 = vset.pattern.permute.xlu0 0
        %552 = vperm.xlu0 %551, %v355
        %v553 = vpop.permute.xlu0 %552
        %556 = vset.pattern.permute.xlu0 0
        %557 = vperm.xlu0 %556, %v356
        %v558 = vpop.permute.xlu0 %557
        %561 = vset.pattern.permute.xlu0 0
        %562 = vperm.xlu0 %561, %v357
        %v563 = vpop.permute.xlu0 %562
        %566 = vset.pattern.permute.xlu0 0
        %567 = vperm.xlu0 %566, %v358
        %v568 = vpop.permute.xlu0 %567
        %571 = vset.pattern.permute.xlu0 0
        %572 = vperm.xlu0 %571, %v359
        %v573 = vpop.permute.xlu0 %572
        %576 = vset.pattern.permute.xlu0 0
        %577 = vperm.xlu0 %576, %v360
        %v578 = vpop.permute.xlu0 %577
        %581 = vset.pattern.permute.xlu0 0
        %582 = vperm.xlu0 %581, %v361
        %v583 = vpop.permute.xlu0 %582
        %vm585 = vcmask 523264
        %v587 = vsel %vm585, %v346, 0
        %v590 = vsel %vm585, %v347, 0
        %v593 = vsel %vm585, %v348, 0
        %v596 = vsel %vm585, %v349, 0
        %v599 = vsel %vm585, %v350, 0
        %v602 = vsel %vm585, %v351, 0
        %v605 = vsel %vm585, %v352, 0
        %v608 = vsel %vm585, %v353, 0
        %610 = vmatpush.msra.mxu0 0.0
        %611 = vmatpush.msra.mxu0 0.0
        %612 = vmatpush.msra.mxu0 0.0
        %613 = vmatpush.msra.mxu0 0.0
        %614 = vmatpush.msra.mxu0 0.0
        %615 = vmatpush.msra.mxu0 0.0
        %616 = vmatpush.msra.mxu0 0.0
        %617 = vmatpush.msra.mxu0 0.0
        %618 = vmatpush.msra.mxu0 %v543
        %619 = vmatpush.msra.mxu0 %v541
        %620 = vmatpush.msra.mxu0 %v539
        %621 = vmatpush.msra.mxu0 %v537
        %622 = vmatpush.msra.mxu0 %v535
        %623 = vmatpush.msra.mxu0 %v533
        %624 = vmatpush.msra.mxu0 %v531
        %625 = vmatpush.msra.mxu0 %v529
        %626 = vmatmul.f32.gmra.mxu0 %v587
        %v627 = vpop.f32.mrf.mxu0
        %v628 = vadd.f32 %v548, %v627
        %629 = vmatmul.f32.gmra.mxu0 %v590
        %v630 = vpop.f32.mrf.mxu0
        %v631 = vadd.f32 %v553, %v630
        %632 = vmatmul.f32.gmra.mxu0 %v593
        %v633 = vpop.f32.mrf.mxu0
        %v634 = vadd.f32 %v558, %v633
        %635 = vmatmul.f32.gmra.mxu0 %v596
        %v636 = vpop.f32.mrf.mxu0
        %v637 = vadd.f32 %v563, %v636
        %638 = vmatmul.f32.gmra.mxu0 %v599
        %v639 = vpop.f32.mrf.mxu0
        %v640 = vadd.f32 %v568, %v639
        %641 = vmatmul.f32.gmra.mxu0 %v602
        %v642 = vpop.f32.mrf.mxu0
        %v643 = vadd.f32 %v573, %v642
        %644 = vmatmul.f32.gmra.mxu0 %v605
        %v645 = vpop.f32.mrf.mxu0
        %v646 = vadd.f32 %v578, %v645
        %647 = vmatmul.f32.gmra.mxu0 %v608
        %v648 = vpop.f32.mrf.mxu0
        %v649 = vadd.f32 %v583, %v648
        %650 = vdwg.mxu0
        %651 = vmatpush.msra.mxu0 0.0
        %652 = vmatpush.msra.mxu0 0.0
        %653 = vmatpush.msra.mxu0 0.0
        %654 = vmatpush.msra.mxu0 0.0
        %655 = vmatpush.msra.mxu0 0.0
        %656 = vmatpush.msra.mxu0 0.0
        %657 = vmatpush.msra.mxu0 0.0
        %658 = vmatpush.msra.mxu0 0.0
        %659 = vmatpush.msra.mxu0 %v544
        %660 = vmatpush.msra.mxu0 %v542
        %661 = vmatpush.msra.mxu0 %v540
        %662 = vmatpush.msra.mxu0 %v538
        %663 = vmatpush.msra.mxu0 %v536
        %664 = vmatpush.msra.mxu0 %v534
        %665 = vmatpush.msra.mxu0 %v532
        %666 = vmatpush.msra.mxu0 %v530
        %667 = vmatmul.f32.gmra.mxu0 %v587
        %v668 = vpop.f32.mrf.mxu0
        %v669 = vadd.f32 %v548, %v668
        %670 = vmatmul.f32.gmra.mxu0 %v590
        %v671 = vpop.f32.mrf.mxu0
        %v672 = vadd.f32 %v553, %v671
        %673 = vmatmul.f32.gmra.mxu0 %v593
        %v674 = vpop.f32.mrf.mxu0
        %v675 = vadd.f32 %v558, %v674
        %676 = vmatmul.f32.gmra.mxu0 %v596
        %v677 = vpop.f32.mrf.mxu0
        %v678 = vadd.f32 %v563, %v677
        %679 = vmatmul.f32.gmra.mxu0 %v599
        %v680 = vpop.f32.mrf.mxu0
        %v681 = vadd.f32 %v568, %v680
        %682 = vmatmul.f32.gmra.mxu0 %v602
        %v683 = vpop.f32.mrf.mxu0
        %v684 = vadd.f32 %v573, %v683
        %685 = vmatmul.f32.gmra.mxu0 %v605
        %v686 = vpop.f32.mrf.mxu0
        %v687 = vadd.f32 %v578, %v686
        %688 = vmatmul.f32.gmra.mxu0 %v608
        %v689 = vpop.f32.mrf.mxu0
        %v690 = vadd.f32 %v583, %v689
        %691 = vdwg.mxu0
        %v692 = vtanh.pop %v628
        %v693 = vtanh.pop %v669
        %v694 = vtanh.pop %v631
        %v695 = vtanh.pop %v672
        %v696 = vtanh.pop %v634
        %v697 = vtanh.pop %v675
        %v698 = vtanh.pop %v637
        %v699 = vtanh.pop %v678
        %v700 = vtanh.pop %v640
        %v701 = vtanh.pop %v681
        %v702 = vtanh.pop %v643
        %v703 = vtanh.pop %v684
        %v704 = vtanh.pop %v646
        %v705 = vtanh.pop %v687
        %v706 = vtanh.pop %v649
        %v707 = vtanh.pop %v690
        %v708 = vmul.f32 %v692, %v692
        %v709 = vmul.f32 %v693, %v693
        %v710 = vmul.f32 %v694, %v694
        %v711 = vmul.f32 %v695, %v695
        %v712 = vmul.f32 %v696, %v696
        %v713 = vmul.f32 %v697, %v697
        %v714 = vmul.f32 %v698, %v698
        %v715 = vmul.f32 %v699, %v699
        %v716 = vmul.f32 %v700, %v700
        %v717 = vmul.f32 %v701, %v701
        %v718 = vmul.f32 %v702, %v702
        %v719 = vmul.f32 %v703, %v703
        %v720 = vmul.f32 %v704, %v704
        %v721 = vmul.f32 %v705, %v705
        %v722 = vmul.f32 %v706, %v706
        %v723 = vmul.f32 %v707, %v707
        %v724 = vsub.f32 1.0, %v708
        %v725 = vsub.f32 1.0, %v709
        %v726 = vsub.f32 1.0, %v710
        %v727 = vsub.f32 1.0, %v711
        %v728 = vsub.f32 1.0, %v712
        %v729 = vsub.f32 1.0, %v713
        %v730 = vsub.f32 1.0, %v714
        %v731 = vsub.f32 1.0, %v715
        %v732 = vsub.f32 1.0, %v716
        %v733 = vsub.f32 1.0, %v717
        %v734 = vsub.f32 1.0, %v718
        %v735 = vsub.f32 1.0, %v719
        %v736 = vsub.f32 1.0, %v720
        %v737 = vsub.f32 1.0, %v721
        %v738 = vsub.f32 1.0, %v722
        %v739 = vsub.f32 1.0, %v723
        %v741 = vsel %vm585, %v362, 0
        %v744 = vsel %vm585, %v363, 0
        %v747 = vsel %vm585, %v364, 0
        %v750 = vsel %vm585, %v365, 0
        %v753 = vsel %vm585, %v366, 0
        %v756 = vsel %vm585, %v367, 0
        %v759 = vsel %vm585, %v368, 0
        %v762 = vsel %vm585, %v369, 0
        %764 = vmatpush.msra.mxu0 0.0
        %765 = vmatpush.msra.mxu0 0.0
        %766 = vmatpush.msra.mxu0 0.0
        %767 = vmatpush.msra.mxu0 0.0
        %768 = vmatpush.msra.mxu0 0.0
        %769 = vmatpush.msra.mxu0 0.0
        %770 = vmatpush.msra.mxu0 0.0
        %771 = vmatpush.msra.mxu0 0.0
        %772 = vmatpush.msra.mxu0 %v738
        %773 = vmatpush.msra.mxu0 %v736
        %774 = vmatpush.msra.mxu0 %v734
        %775 = vmatpush.msra.mxu0 %v732
        %776 = vmatpush.msra.mxu0 %v730
        %777 = vmatpush.msra.mxu0 %v728
        %778 = vmatpush.msra.mxu0 %v726
        %779 = vmatpush.msra.mxu0 %v724
        %780 = vmatmul.f32.gmra.mxu0 %v741
        %v781 = vpop.f32.mrf.mxu0
        %v782 = vadd.f32 0.0, %v781
        %783 = vmatmul.f32.gmra.mxu0 %v744
        %v784 = vpop.f32.mrf.mxu0
        %v785 = vadd.f32 0.0, %v784
        %786 = vmatmul.f32.gmra.mxu0 %v747
        %v787 = vpop.f32.mrf.mxu0
        %v788 = vadd.f32 0.0, %v787
        %789 = vmatmul.f32.gmra.mxu0 %v750
        %v790 = vpop.f32.mrf.mxu0
        %v791 = vadd.f32 0.0, %v790
        %792 = vmatmul.f32.gmra.mxu0 %v753
        %v793 = vpop.f32.mrf.mxu0
        %v794 = vadd.f32 0.0, %v793
        %795 = vmatmul.f32.gmra.mxu0 %v756
        %v796 = vpop.f32.mrf.mxu0
        %v797 = vadd.f32 0.0, %v796
        %798 = vmatmul.f32.gmra.mxu0 %v759
        %v799 = vpop.f32.mrf.mxu0
        %v800 = vadd.f32 0.0, %v799
        %801 = vmatmul.f32.gmra.mxu0 %v762
        %v802 = vpop.f32.mrf.mxu0
        %v803 = vadd.f32 0.0, %v802
        %804 = vdwg.mxu0
        %805 = vmatpush.msra.mxu0 0.0
        %806 = vmatpush.msra.mxu0 0.0
        %807 = vmatpush.msra.mxu0 0.0
        %808 = vmatpush.msra.mxu0 0.0
        %809 = vmatpush.msra.mxu0 0.0
        %810 = vmatpush.msra.mxu0 0.0
        %811 = vmatpush.msra.mxu0 0.0
        %812 = vmatpush.msra.mxu0 0.0
        %813 = vmatpush.msra.mxu0 %v739
        %814 = vmatpush.msra.mxu0 %v737
        %815 = vmatpush.msra.mxu0 %v735
        %816 = vmatpush.msra.mxu0 %v733
        %817 = vmatpush.msra.mxu0 %v731
        %818 = vmatpush.msra.mxu0 %v729
        %819 = vmatpush.msra.mxu0 %v727
        %820 = vmatpush.msra.mxu0 %v725
        %821 = vmatmul.f32.gmra.mxu0 %v741
        %v822 = vpop.f32.mrf.mxu0
        %v823 = vadd.f32 0.0, %v822
        %824 = vmatmul.f32.gmra.mxu0 %v744
        %v825 = vpop.f32.mrf.mxu0
        %v826 = vadd.f32 0.0, %v825
        %827 = vmatmul.f32.gmra.mxu0 %v747
        %v828 = vpop.f32.mrf.mxu0
        %v829 = vadd.f32 0.0, %v828
        %830 = vmatmul.f32.gmra.mxu0 %v750
        %v831 = vpop.f32.mrf.mxu0
        %v832 = vadd.f32 0.0, %v831
        %833 = vmatmul.f32.gmra.mxu0 %v753
        %v834 = vpop.f32.mrf.mxu0
        %v835 = vadd.f32 0.0, %v834
        %836 = vmatmul.f32.gmra.mxu0 %v756
        %v837 = vpop.f32.mrf.mxu0
        %v838 = vadd.f32 0.0, %v837
        %839 = vmatmul.f32.gmra.mxu0 %v759
        %v840 = vpop.f32.mrf.mxu0
        %v841 = vadd.f32 0.0, %v840
        %842 = vmatmul.f32.gmra.mxu0 %v762
        %v843 = vpop.f32.mrf.mxu0
        %v844 = vadd.f32 0.0, %v843
        %845 = vdwg.mxu0
        %v846 = vmul.f32 %v529, %v529
        %v847 = vmul.f32 %v530, %v530
        %v848 = vmul.f32 %v531, %v531
        %v849 = vmul.f32 %v532, %v532
        %v850 = vmul.f32 %v533, %v533
        %v851 = vmul.f32 %v534, %v534
        %v852 = vmul.f32 %v535, %v535
        %v853 = vmul.f32 %v536, %v536
        %v854 = vmul.f32 %v537, %v537
        %v855 = vmul.f32 %v538, %v538
        %v856 = vmul.f32 %v539, %v539
        %v857 = vmul.f32 %v540, %v540
        %v858 = vmul.f32 %v541, %v541
        %v859 = vmul.f32 %v542, %v542
        %v860 = vmul.f32 %v543, %v543
        %v861 = vmul.f32 %v544, %v544
        %v862 = vsub.f32 1.0, %v846
        %v863 = vsub.f32 1.0, %v847
        %v864 = vsub.f32 1.0, %v848
        %v865 = vsub.f32 1.0, %v849
        %v866 = vsub.f32 1.0, %v850
        %v867 = vsub.f32 1.0, %v851
        %v868 = vsub.f32 1.0, %v852
        %v869 = vsub.f32 1.0, %v853
        %v870 = vsub.f32 1.0, %v854
        %v871 = vsub.f32 1.0, %v855
        %v872 = vsub.f32 1.0, %v856
        %v873 = vsub.f32 1.0, %v857
        %v874 = vsub.f32 1.0, %v858
        %v875 = vsub.f32 1.0, %v859
        %v876 = vsub.f32 1.0, %v860
        %v877 = vsub.f32 1.0, %v861
        %v878 = vmul.f32 %v782, %v862
        %v879 = vmul.f32 %v823, %v863
        %v880 = vmul.f32 %v785, %v864
        %v881 = vmul.f32 %v826, %v865
        %v882 = vmul.f32 %v788, %v866
        %v883 = vmul.f32 %v829, %v867
        %v884 = vmul.f32 %v791, %v868
        %v885 = vmul.f32 %v832, %v869
        %v886 = vmul.f32 %v794, %v870
        %v887 = vmul.f32 %v835, %v871
        %v888 = vmul.f32 %v797, %v872
        %v889 = vmul.f32 %v838, %v873
        %v890 = vmul.f32 %v800, %v874
        %v891 = vmul.f32 %v841, %v875
        %v892 = vmul.f32 %v803, %v876
        %v893 = vmul.f32 %v844, %v877
        %v895 = vsel %vm585, %v370, 0
        %v898 = vsel %vm585, %v371, 0
        %v901 = vsel %vm585, %v372, 0
        %v904 = vsel %vm585, %v373, 0
        %906 = vmatpush.msra.mxu0 0.0
        %907 = vmatpush.msra.mxu0 0.0
        %908 = vmatpush.msra.mxu0 0.0
        %909 = vmatpush.msra.mxu0 0.0
        %910 = vmatpush.msra.mxu0 0.0
        %911 = vmatpush.msra.mxu0 0.0
        %912 = vmatpush.msra.mxu0 0.0
        %913 = vmatpush.msra.mxu0 0.0
        %914 = vmatpush.msra.mxu0 %v892
        %915 = vmatpush.msra.mxu0 %v890
        %916 = vmatpush.msra.mxu0 %v888
        %917 = vmatpush.msra.mxu0 %v886
        %918 = vmatpush.msra.mxu0 %v884
        %919 = vmatpush.msra.mxu0 %v882
        %920 = vmatpush.msra.mxu0 %v880
        %921 = vmatpush.msra.mxu0 %v878
        %922 = vmatmul.f32.gmra.mxu0 %v895
        %v923 = vpop.f32.mrf.mxu0
        %v924 = vadd.f32 0.0, %v923
        %925 = vmatmul.f32.gmra.mxu0 %v898
        %v926 = vpop.f32.mrf.mxu0
        %v927 = vadd.f32 0.0, %v926
        %928 = vmatmul.f32.gmra.mxu0 %v901
        %v929 = vpop.f32.mrf.mxu0
        %v930 = vadd.f32 0.0, %v929
        %931 = vmatmul.f32.gmra.mxu0 %v904
        %v932 = vpop.f32.mrf.mxu0
        %v933 = vadd.f32 0.0, %v932
        %934 = vdwg.mxu0
        %935 = vmatpush.msra.mxu0 0.0
        %936 = vmatpush.msra.mxu0 0.0
        %937 = vmatpush.msra.mxu0 0.0
        %938 = vmatpush.msra.mxu0 0.0
        %939 = vmatpush.msra.mxu0 0.0
        %940 = vmatpush.msra.mxu0 0.0
        %941 = vmatpush.msra.mxu0 0.0
        %942 = vmatpush.msra.mxu0 0.0
        %943 = vmatpush.msra.mxu0 %v893
        %944 = vmatpush.msra.mxu0 %v891
        %945 = vmatpush.msra.mxu0 %v889
        %946 = vmatpush.msra.mxu0 %v887
        %947 = vmatpush.msra.mxu0 %v885
        %948 = vmatpush.msra.mxu0 %v883
        %949 = vmatpush.msra.mxu0 %v881
        %950 = vmatpush.msra.mxu0 %v879
        %951 = vmatmul.f32.gmra.mxu0 %v895
        %v952 = vpop.f32.mrf.mxu0
        %v953 = vadd.f32 0.0, %v952
        %954 = vmatmul.f32.gmra.mxu0 %v898
        %v955 = vpop.f32.mrf.mxu0
        %v956 = vadd.f32 0.0, %v955
        %957 = vmatmul.f32.gmra.mxu0 %v901
        %v958 = vpop.f32.mrf.mxu0
        %v959 = vadd.f32 0.0, %v958
        %960 = vmatmul.f32.gmra.mxu0 %v904
        %v961 = vpop.f32.mrf.mxu0
        %v962 = vadd.f32 0.0, %v961
        %963 = vdwg.mxu0
        %964 = vst [vmem:[%s327] sm:$0xff] %v924
        %965 = vst [vmem:[%s327 + $0x8] sm:$0xff] %v953
        %966 = vst [vmem:[%s327 + $0x10] sm:$0xff] %v927
        %967 = vst [vmem:[%s327 + $0x18] sm:$0xff] %v956
        %968 = vst [vmem:[%s327 + $0x20] sm:$0xff] %v930
        %969 = vst [vmem:[%s327 + $0x28] sm:$0xff] %v959
        %970 = vst [vmem:[%s327 + $0x30] sm:$0xff] %v933
        %971 = vst [vmem:[%s327 + $0x38] sm:$0xff] %v962
        %s972 = sand.u32 %s182, 1
        %s973 = scalar_lea.sflag [#allocation5], %s972
        %s974 = sand.u32 %s182, 1
        %s975 = smul.addr %s974, 64
        %s976 = scalar_lea.vmem [#allocation6], %s975
        // Predicated region
        $region76: #{tpu_custom_call.1} parent=66 // pred_check
          %p977 = pneg %p192
        $region77: #{tpu_custom_call.1} parent=66 // pred_check_branch
          %979 = sbr.rel (%p977) target = $region79
        $region78: #{tpu_custom_call.1} parent=66 // pred_region
          %s980 = smul.u32 2, %s22
          %982 = vsyncadd %s973, 0
          %s983 = smul.addr %s980, 8
          %s984 = scalar_lea.hbm %s7, %s983
          %s985 = sshll.u32 %s976, 4
          %s986 = int_to_ptr.vmem [resolvable:$true] %s985
          %s987 = sshll.u32 %s984, 4
          %s988 = int_to_ptr.hbm [resolvable:$true] %s987
          %993 = dma.vmem_to_hbm [thread:$0]  %s986, 1024, %s988, %s973, 256, 512, 16
        $region79: #{tpu_custom_call.1} parent=66 // pred_fallthru
          _
      $region67: #{tpu_custom_call.1} parent=5 // pred_fallthru
        _
      %p994 = scmp.le.s32.totalorder 2, %s17
      // Predicated region
      $region80: #{tpu_custom_call.1} parent=5 // pred_check
        %p995 = pneg %p994
      $region81: #{tpu_custom_call.1} parent=5 // pred_check_branch
        %997 = sbr.rel (%p995) target = $region83
      $region82: #{tpu_custom_call.1} parent=5 // pred_region
        %s998 = ssub.s32 %s17, 2
        // Predicated region
        $region84: #{tpu_custom_call.1} parent=82 // pred_check
          %p999 = pneg %p198
        $region85: #{tpu_custom_call.1} parent=82 // pred_check_branch
          %1001 = sbr.rel (%p999) target = $region87
        $region86: #{tpu_custom_call.1} parent=82 // pred_region
          %s1002 = sand.u32 %s183, 1
          %s1003 = scalar_lea.sflag [#allocation5], %s1002
          %s1004 = sand.u32 %s183, 1
          %s1005 = smul.addr %s1004, 64
          %s1006 = scalar_lea.vmem [#allocation6], %s1005
          %1008 = dma.done %s1003, 1024
        $region87: #{tpu_custom_call.1} parent=82 // pred_fallthru
          _
      $region83: #{tpu_custom_call.1} parent=5 // pred_fallthru
        _
    $region6: #{tpu_custom_call.1} parent=1 // loop_footer
      %s21 = sadd.s32 1, %s17
    $region7: #{tpu_custom_call.1} parent=1 // loop_footer_branch
      %16 = sbr.rel target = $region3
    $region8: #{tpu_custom_call.1} parent=1 // loop_exit
      _
    %1009 = vsyncpa [#allocation4], 1
    %s1010 = scalar_lea.sflag [#allocation4], 1
    %1011 = vsyncpa %s1010, 1
    %1012 = vsyncpa [#allocation5], 1
    %s1013 = scalar_lea.sflag [#allocation5], 1
    %1014 = vsyncpa %s1013, 1

</llo_original>
